<compile_context>
chip_gen: v5e
topology: v5e:2x2
jax: 0.10.0
libtpu: 0.0.40
codegen_flags: <defaults>
</compile_context>

<pallas_src>
import jax
import jax.numpy as jnp
from jax.scipy.linalg import block_diag
from jax.experimental import pallas as pl
from jax.experimental.pallas import tpu as pltpu

INPUT_DIM = 12
FEAT_PAD = 16          # input feature rows padded to a sublane multiple
HIDDEN_BODY = 64
HIDDEN_HEAD = 32
OUTPUT_DIM = 10
NR_EVENT = 2
BN_EPS = 1e-5
LOGITS = NR_EVENT * OUTPUT_DIM   # 20
HEAD_OUT_PAD = 24                # 20 logits padded to a sublane multiple
BODY_OUT_PAD = FEAT_PAD          # 12 body outputs padded to 16


# ------------------------------ kernel ------------------------------------

def deephit_kernel(x_ref, w1_ref, w23_ref, b_ref, out_ref):
    # x_ref   : (16, TB)  f32  rows 0:12 features, rows 12:16 zero
    # w1_ref  : (128, 16) bf16 rows 0:64 body L1^T, rows 64:128 fused-head L1^T
    # w23_ref : (168, 64) bf16 [0:64] body L2^T | [64:128] head L2^T |
    #                          [128:144] body L3^T (pad 16) | [144:168] head L3^T (pad 24)
    # b_ref   : (64, 8)   f32  cols: 0 body b1, 1 body b2, 2 body b3, 3 head b1,
    #                          4 head b2, 5 head b3 (zero padded rows/cols)
    # out_ref : (20, TB)  f32  softmax probabilities (feature-major)
    xf = x_ref[...]
    w1 = w1_ref[...]
    w23 = w23_ref[...]
    b = b_ref[...]

    xb = xf.astype(jnp.bfloat16)

    # ---- body: Linear-ReLU-[BN folded]-Linear-ReLU-[BN folded]-Linear ----
    h = jnp.dot(w1[:HIDDEN_BODY], xb, preferred_element_type=jnp.float32) + b[:, 0:1]
    h = jnp.maximum(h, 0.0).astype(jnp.bfloat16)                       # (64, TB)
    h = jnp.dot(w23[:HIDDEN_BODY], h, preferred_element_type=jnp.float32) + b[:, 1:2]
    h = jnp.maximum(h, 0.0).astype(jnp.bfloat16)                       # (64, TB)
    body = jnp.dot(w23[2 * HIDDEN_BODY:2 * HIDDEN_BODY + BODY_OUT_PAD], h,
                   preferred_element_type=jnp.float32) + b[:BODY_OUT_PAD, 2:3]  # (16, TB)

    # relu + residual; padded rows 12:16 stay exactly zero (zero weights/bias/x)
    inp = (jnp.maximum(body, 0.0) + xf).astype(jnp.bfloat16)           # (16, TB)

    # ---- fused heads (head1 | head2 via block-diagonal weights) ----
    g = jnp.dot(w1[HIDDEN_BODY:], inp, preferred_element_type=jnp.float32) + b[:, 3:4]
    g = jnp.maximum(g, 0.0).astype(jnp.bfloat16)                       # (64, TB)
    g = jnp.dot(w23[HIDDEN_BODY:2 * HIDDEN_BODY], g,
                preferred_element_type=jnp.float32) + b[:, 4:5]
    g = jnp.maximum(g, 0.0).astype(jnp.bfloat16)                       # (64, TB)
    head = jnp.dot(w23[2 * HIDDEN_BODY + BODY_OUT_PAD:], g,
                   preferred_element_type=jnp.float32) + b[:HEAD_OUT_PAD, 5:6]  # (24, TB)

    logits = head[:LOGITS]                                             # (20, TB)

    # softmax over the 20 logits (sublane axis)
    m = jnp.max(logits, axis=0, keepdims=True)                         # (1, TB)
    e = jnp.exp(logits - m)
    denom = jnp.sum(e, axis=0, keepdims=True)
    out_ref[...] = e * pl.reciprocal(denom, approx=False)


# ------------------------------ wrapper ------------------------------------

def _choose_tb(B, block_b):
    """Batch tile (lane axis): multiple of 128, <= block_b, >=2 steps when possible."""
    block_b = max(128, (block_b // 128) * 128)
    bp128 = max(128, ((B + 127) // 128) * 128)
    tb = min(block_b, bp128)
    # keep at least 2 grid steps when the batch allows it (v7x has 2 TensorCores)
    if bp128 > 128 and tb >= bp128:
        tb = ((bp128 // 2 + 127) // 128) * 128
    return tb


def deephit_forward(x, packed, *, block_b=2048):
    """x: (B, 12) f32; packed: (W1T, W23, BIAS) from pack_params."""
    W1T, W23, BIAS = packed
    B = x.shape[0]

    TB = _choose_tb(B, block_b)
    Bp = ((B + TB - 1) // TB) * TB
    grid = (Bp // TB,)

    # feature-major input: (16, Bp), zero-padded feature rows and batch lanes
    xT = jnp.zeros((FEAT_PAD, Bp), jnp.float32).at[:INPUT_DIM, :B].set(x.T)

    const = lambda i: (0, 0)
    outT = pl.pallas_call(
        deephit_kernel,
        out_shape=jax.ShapeDtypeStruct((LOGITS, Bp), jnp.float32),
        grid=grid,
        in_specs=[
            pl.BlockSpec((FEAT_PAD, TB), lambda i: (0, i)),
            pl.BlockSpec(W1T.shape, const),
            pl.BlockSpec(W23.shape, const),
            pl.BlockSpec(BIAS.shape, const),
        ],
        out_specs=pl.BlockSpec((LOGITS, TB), lambda i: (0, i)),
        compiler_params=pltpu.CompilerParams(
            dimension_semantics=("parallel",)),
    )(xT, W1T, W23, BIAS)

    return outT[:, :B].T.reshape(B, NR_EVENT, OUTPUT_DIM)


# ------------------------- parameter construction -------------------------

def _linear_init(key, fan_in, fan_out):
    kw, kb = jax.random.split(key)
    bound = 1.0 / jnp.sqrt(fan_in)
    w = jax.random.uniform(kw, (fan_in, fan_out), jnp.float32, -bound, bound)
    b = jax.random.uniform(kb, (1, fan_out), jnp.float32, -bound, bound)
    return w, b


def _bn_eval_affine(key, dim):
    # deterministic, non-trivial BN params (eval mode; running_mean=0, running_var=1)
    kg, kb = jax.random.split(key)
    gamma = 1.0 + 0.1 * jax.random.normal(kg, (1, dim), jnp.float32)
    beta = 0.1 * jax.random.normal(kb, (1, dim), jnp.float32)
    running_mean = jnp.zeros((1, dim), jnp.float32)
    running_var = jnp.ones((1, dim), jnp.float32)
    scale = gamma / jnp.sqrt(running_var + BN_EPS)
    shift = beta - running_mean * scale
    return scale, shift


def make_fc_net_params(key, input_dim, hidden_dim, output_dim):
    k1, k2, k3, kb1, kb2 = jax.random.split(key, 5)
    w1, b1 = _linear_init(k1, input_dim, hidden_dim)
    s1, t1 = _bn_eval_affine(kb1, hidden_dim)
    w2, b2 = _linear_init(k2, hidden_dim, hidden_dim)
    s2, t2 = _bn_eval_affine(kb2, hidden_dim)
    w3, b3 = _linear_init(k3, hidden_dim, output_dim)
    return [w1, b1, s1, t1, w2, b2, s2, t2, w3, b3]


def pack_params(body_p, head1_p, head2_p):
    """Fold BN into following linears, fuse heads, build transposed bf16 slabs."""
    def fold(p):
        w1, b1, s1, t1, w2, b2, s2, t2, w3, b3 = p
        b1, s1, t1 = b1.reshape(-1), s1.reshape(-1), t1.reshape(-1)
        b2, s2, t2 = b2.reshape(-1), s2.reshape(-1), t2.reshape(-1)
        b3 = b3.reshape(-1)
        w2f = w2 * s1[:, None]
        b2f = b2 + t1 @ w2
        w3f = w3 * s2[:, None]
        b3f = b3 + t2 @ w3
        return w1, b1, w2f, b2f, w3f, b3f

    bw1, bb1, bw2, bb2, bw3, bb3 = fold(body_p)
    h1w1, h1b1, h1w2, h1b2, h1w3, h1b3 = fold(head1_p)
    h2w1, h2b1, h2w2, h2b2, h2w3, h2b3 = fold(head2_p)

    # fuse the two heads: hidden = [32 | 32], output = [10 | 10]
    hw1 = jnp.concatenate([h1w1, h2w1], axis=1)      # (12, 64)
    hb1 = jnp.concatenate([h1b1, h2b1], axis=0)      # (64,)
    hw2 = block_diag(h1w2, h2w2)                     # (64, 64)
    hb2 = jnp.concatenate([h1b2, h2b2], axis=0)      # (64,)
    hw3 = block_diag(h1w3, h2w3)                     # (64, 20)
    hb3 = jnp.concatenate([h1b3, h2b3], axis=0)      # (20,)

    def pad_cols(a, n):
        return jnp.pad(a, ((0, 0), (0, n - a.shape[1])))

    def pad_rows(a, n):
        return jnp.pad(a, ((0, n - a.shape[0]), (0, 0)))

    def pad_vec(v, n):
        return jnp.pad(v, (0, n - v.shape[0]))

    # transposed (feature-major) weight slabs
    W1T = jnp.concatenate([pad_cols(bw1.T, FEAT_PAD),
                           pad_cols(hw1.T, FEAT_PAD)], axis=0)          # (128, 16)
    W23 = jnp.concatenate([bw2.T,                                        # (64, 64)
                           hw2.T,                                        # (64, 64)
                           pad_rows(bw3.T, BODY_OUT_PAD),                # (16, 64)
                           pad_rows(hw3.T, HEAD_OUT_PAD)], axis=0)       # (24, 64) -> (168, 64)
    BIAS = jnp.stack([bb1, bb2, pad_vec(bb3, HIDDEN_BODY),
                      hb1, hb2, pad_vec(hb3, HIDDEN_BODY),
                      jnp.zeros((HIDDEN_BODY,), jnp.float32),
                      jnp.zeros((HIDDEN_BODY,), jnp.float32)], axis=1)   # (64, 8)

    return (W1T.astype(jnp.bfloat16), W23.astype(jnp.bfloat16),
            BIAS.astype(jnp.float32))


# --------------------------- pure-JAX reference ---------------------------

def _fc_net_ref(h, p):
    w1, b1, s1, t1, w2, b2, s2, t2, w3, b3 = p
    h = jnp.maximum(h @ w1 + b1, 0.0) * s1 + t1
    h = jnp.maximum(h @ w2 + b2, 0.0) * s2 + t2
    return h @ w3 + b3


def deephit_ref(x, body_p, head1_p, head2_p):
    h = jnp.maximum(_fc_net_ref(x, body_p), 0.0)
    inp = h + x
    o1 = _fc_net_ref(inp, head1_p)
    o2 = _fc_net_ref(inp, head2_p)
    logits = jnp.concatenate([o1, o2], axis=-1)
    return jax.nn.softmax(logits, axis=-1).reshape(x.shape[0], NR_EVENT, OUTPUT_DIM)


if __name__ == "__main__":
    key = jax.random.PRNGKey(0)
    kx, kbody, kh1, kh2, kx2 = jax.random.split(key, 5)

    body_p = make_fc_net_params(kbody, INPUT_DIM, HIDDEN_BODY, INPUT_DIM)
    head1_p = make_fc_net_params(kh1, INPUT_DIM, HIDDEN_HEAD, OUTPUT_DIM)
    head2_p = make_fc_net_params(kh2, INPUT_DIM, HIDDEN_HEAD, OUTPUT_DIM)
    packed = pack_params(body_p, head1_p, head2_p)

    # small-shape main test (single tile path)
    B = 8
    x = jax.random.normal(kx, (B, INPUT_DIM), jnp.float32)
    out = jax.block_until_ready(deephit_forward(x, packed))
    ref = deephit_ref(x, body_p, head1_p, head2_p)
    assert out.shape == (B, NR_EVENT, OUTPUT_DIM)
    # bf16 matmuls with f32 accumulation -> compare probabilities at 3e-2 abs
    assert jnp.allclose(out, ref, atol=3e-2, rtol=0.0)
    assert jnp.allclose(out.reshape(B, -1).sum(axis=-1), 1.0, atol=1e-5)

    # exercise the multi-tile / padded-batch grid path (TB=128, grid=(2,))
    B2 = 200
    x2 = jax.random.normal(kx2, (B2, INPUT_DIM), jnp.float32)
    out2 = jax.block_until_ready(deephit_forward(x2, packed, block_b=128))
    ref2 = deephit_ref(x2, body_p, head1_p, head2_p)
    assert out2.shape == (B2, NR_EVENT, OUTPUT_DIM)
    assert jnp.allclose(out2, ref2, atol=3e-2, rtol=0.0)
    assert jnp.allclose(out2.reshape(B2, -1).sum(axis=-1), 1.0, atol=1e-5)

    print("KERNEL_OK")
</pallas_src>

<mosaic_0001>
module attributes {stable_mosaic.version = 11 : i64} {
  func.func @deephit_kernel(%arg0: i32, %arg1: memref<16x128xf32, #tpu.memory_space<vmem>>, %arg2: memref<128x16xbf16, #tpu.memory_space<vmem>>, %arg3: memref<168x64xbf16, #tpu.memory_space<vmem>>, %arg4: memref<64x8xf32, #tpu.memory_space<vmem>>, %arg5: memref<20x128xf32, #tpu.memory_space<vmem>>) attributes {dimension_semantics = [#tpu.dimension_semantics<parallel>], iteration_bounds = array<i64: 1>, scalar_prefetch = 0 : i64, scratch_operands = 0 : i64, tpu.core_type = #tpu.core_type<tc>, window_params = [{transform_indices = @transform_0, window_bounds = array<i64: 16, 128>}, {pipeline_mode = #tpu.pipeline_mode<synchronous>, transform_indices = @transform_1, window_bounds = array<i64: 128, 16>}, {pipeline_mode = #tpu.pipeline_mode<synchronous>, transform_indices = @transform_2, window_bounds = array<i64: 168, 64>}, {pipeline_mode = #tpu.pipeline_mode<synchronous>, transform_indices = @transform_3, window_bounds = array<i64: 64, 8>}, {transform_indices = @transform_4, window_bounds = array<i64: 20, 128>}]} {
    %c0 = arith.constant 0 : index
    %c0_0 = arith.constant 0 : index
    %0 = vector.load %arg1[%c0, %c0_0] : memref<16x128xf32, #tpu.memory_space<vmem>>, vector<16x128xf32>
    %c0_1 = arith.constant 0 : index
    %c0_2 = arith.constant 0 : index
    %1 = vector.load %arg2[%c0_1, %c0_2] : memref<128x16xbf16, #tpu.memory_space<vmem>>, vector<128x16xbf16>
    %c0_3 = arith.constant 0 : index
    %c0_4 = arith.constant 0 : index
    %2 = vector.load %arg3[%c0_3, %c0_4] : memref<168x64xbf16, #tpu.memory_space<vmem>>, vector<168x64xbf16>
    %c0_5 = arith.constant 0 : index
    %c0_6 = arith.constant 0 : index
    %3 = vector.load %arg4[%c0_5, %c0_6] : memref<64x8xf32, #tpu.memory_space<vmem>>, vector<64x8xf32>
    %4 = arith.truncf %0 : vector<16x128xf32> to vector<16x128xbf16>
    %5 = vector.extract_strided_slice %1 {offsets = [0, 0], sizes = [64, 16], strides = [1, 1]} : vector<128x16xbf16> to vector<64x16xbf16>
    %cst = arith.constant dense<0.000000e+00> : vector<64x128xf32>
    %6 = tpu.matmul %5, %4, %cst {dimension_numbers = #tpu.dot_dimension_numbers<[1], [0], [0], [1], [0, 0, 1, 1], [], []>} : vector<64x16xbf16>, vector<16x128xbf16>, vector<64x128xf32> -> vector<64x128xf32>
    %7 = vector.extract_strided_slice %3 {offsets = [0, 0], sizes = [64, 1], strides = [1, 1]} : vector<64x8xf32> to vector<64x1xf32>
    %8 = vector.broadcast %7 : vector<64x1xf32> to vector<64x128xf32>
    %9 = arith.addf %6, %8 : vector<64x128xf32>
    %cst_7 = arith.constant 0.000000e+00 : f32
    %10 = vector.broadcast %cst_7 : f32 to vector<64x128xf32>
    %11 = arith.maximumf %9, %10 : vector<64x128xf32>
    %12 = arith.truncf %11 : vector<64x128xf32> to vector<64x128xbf16>
    %13 = vector.extract_strided_slice %2 {offsets = [0, 0], sizes = [64, 64], strides = [1, 1]} : vector<168x64xbf16> to vector<64x64xbf16>
    %cst_8 = arith.constant dense<0.000000e+00> : vector<64x128xf32>
    %14 = tpu.matmul %13, %12, %cst_8 {dimension_numbers = #tpu.dot_dimension_numbers<[1], [0], [0], [1], [0, 0, 1, 1], [], []>} : vector<64x64xbf16>, vector<64x128xbf16>, vector<64x128xf32> -> vector<64x128xf32>
    %15 = vector.extract_strided_slice %3 {offsets = [0, 1], sizes = [64, 1], strides = [1, 1]} : vector<64x8xf32> to vector<64x1xf32>
    %16 = vector.broadcast %15 : vector<64x1xf32> to vector<64x128xf32>
    %17 = arith.addf %14, %16 : vector<64x128xf32>
    %cst_9 = arith.constant 0.000000e+00 : f32
    %18 = vector.broadcast %cst_9 : f32 to vector<64x128xf32>
    %19 = arith.maximumf %17, %18 : vector<64x128xf32>
    %20 = arith.truncf %19 : vector<64x128xf32> to vector<64x128xbf16>
    %21 = vector.extract_strided_slice %2 {offsets = [128, 0], sizes = [16, 64], strides = [1, 1]} : vector<168x64xbf16> to vector<16x64xbf16>
    %cst_10 = arith.constant dense<0.000000e+00> : vector<16x128xf32>
    %22 = tpu.matmul %21, %20, %cst_10 {dimension_numbers = #tpu.dot_dimension_numbers<[1], [0], [0], [1], [0, 0, 1, 1], [], []>} : vector<16x64xbf16>, vector<64x128xbf16>, vector<16x128xf32> -> vector<16x128xf32>
    %23 = vector.extract_strided_slice %3 {offsets = [0, 2], sizes = [16, 1], strides = [1, 1]} : vector<64x8xf32> to vector<16x1xf32>
    %24 = vector.broadcast %23 : vector<16x1xf32> to vector<16x128xf32>
    %25 = arith.addf %22, %24 : vector<16x128xf32>
    %cst_11 = arith.constant 0.000000e+00 : f32
    %26 = vector.broadcast %cst_11 : f32 to vector<16x128xf32>
    %27 = arith.maximumf %25, %26 : vector<16x128xf32>
    %28 = arith.addf %27, %0 : vector<16x128xf32>
    %29 = arith.truncf %28 : vector<16x128xf32> to vector<16x128xbf16>
    %30 = vector.extract_strided_slice %1 {offsets = [64, 0], sizes = [64, 16], strides = [1, 1]} : vector<128x16xbf16> to vector<64x16xbf16>
    %cst_12 = arith.constant dense<0.000000e+00> : vector<64x128xf32>
    %31 = tpu.matmul %30, %29, %cst_12 {dimension_numbers = #tpu.dot_dimension_numbers<[1], [0], [0], [1], [0, 0, 1, 1], [], []>} : vector<64x16xbf16>, vector<16x128xbf16>, vector<64x128xf32> -> vector<64x128xf32>
    %32 = vector.extract_strided_slice %3 {offsets = [0, 3], sizes = [64, 1], strides = [1, 1]} : vector<64x8xf32> to vector<64x1xf32>
    %33 = vector.broadcast %32 : vector<64x1xf32> to vector<64x128xf32>
    %34 = arith.addf %31, %33 : vector<64x128xf32>
    %cst_13 = arith.constant 0.000000e+00 : f32
    %35 = vector.broadcast %cst_13 : f32 to vector<64x128xf32>
    %36 = arith.maximumf %34, %35 : vector<64x128xf32>
    %37 = arith.truncf %36 : vector<64x128xf32> to vector<64x128xbf16>
    %38 = vector.extract_strided_slice %2 {offsets = [64, 0], sizes = [64, 64], strides = [1, 1]} : vector<168x64xbf16> to vector<64x64xbf16>
    %cst_14 = arith.constant dense<0.000000e+00> : vector<64x128xf32>
    %39 = tpu.matmul %38, %37, %cst_14 {dimension_numbers = #tpu.dot_dimension_numbers<[1], [0], [0], [1], [0, 0, 1, 1], [], []>} : vector<64x64xbf16>, vector<64x128xbf16>, vector<64x128xf32> -> vector<64x128xf32>
    %40 = vector.extract_strided_slice %3 {offsets = [0, 4], sizes = [64, 1], strides = [1, 1]} : vector<64x8xf32> to vector<64x1xf32>
    %41 = vector.broadcast %40 : vector<64x1xf32> to vector<64x128xf32>
    %42 = arith.addf %39, %41 : vector<64x128xf32>
    %cst_15 = arith.constant 0.000000e+00 : f32
    %43 = vector.broadcast %cst_15 : f32 to vector<64x128xf32>
    %44 = arith.maximumf %42, %43 : vector<64x128xf32>
    %45 = arith.truncf %44 : vector<64x128xf32> to vector<64x128xbf16>
    %46 = vector.extract_strided_slice %2 {offsets = [144, 0], sizes = [24, 64], strides = [1, 1]} : vector<168x64xbf16> to vector<24x64xbf16>
    %cst_16 = arith.constant dense<0.000000e+00> : vector<24x128xf32>
    %47 = tpu.matmul %46, %45, %cst_16 {dimension_numbers = #tpu.dot_dimension_numbers<[1], [0], [0], [1], [0, 0, 1, 1], [], []>} : vector<24x64xbf16>, vector<64x128xbf16>, vector<24x128xf32> -> vector<24x128xf32>
    %48 = vector.extract_strided_slice %3 {offsets = [0, 5], sizes = [24, 1], strides = [1, 1]} : vector<64x8xf32> to vector<24x1xf32>
    %49 = vector.broadcast %48 : vector<24x1xf32> to vector<24x128xf32>
    %50 = arith.addf %47, %49 : vector<24x128xf32>
    %51 = vector.extract_strided_slice %50 {offsets = [0, 0], sizes = [20, 128], strides = [1, 1]} : vector<24x128xf32> to vector<20x128xf32>
    %cst_17 = arith.constant dense<0xFF800000> : vector<128xf32>
    %52 = vector.multi_reduction <maximumf>, %51, %cst_17 [0] : vector<20x128xf32> to vector<128xf32>
    %53 = vector.shape_cast %52 : vector<128xf32> to vector<1x128xf32>
    %54 = vector.broadcast %53 : vector<1x128xf32> to vector<20x128xf32>
    %55 = arith.subf %51, %54 : vector<20x128xf32>
    %56 = math.exp %55 : vector<20x128xf32>
    %cst_18 = arith.constant dense<0.000000e+00> : vector<128xf32>
    %57 = vector.multi_reduction <add>, %56, %cst_18 [0] : vector<20x128xf32> to vector<128xf32>
    %58 = vector.shape_cast %57 : vector<128xf32> to vector<1x128xf32>
    %59 = tpu.reciprocal %58 : vector<1x128xf32> -> vector<1x128xf32>
    %60 = vector.broadcast %59 : vector<1x128xf32> to vector<20x128xf32>
    %61 = arith.mulf %56, %60 : vector<20x128xf32>
    %c0_19 = arith.constant 0 : index
    %c0_20 = arith.constant 0 : index
    %62 = vector.load %arg5[%c0_19, %c0_20] : memref<20x128xf32, #tpu.memory_space<vmem>>, vector<20x128xf32>
    tpu.vector_store %arg5[%c0_19, %c0_20], %61 {strides = array<i32>} : memref<20x128xf32, #tpu.memory_space<vmem>>, vector<20x128xf32>,
    return
  }
  func.func @transform_0(%arg0: i32) -> (i32, i32) {
    %c0_i32 = arith.constant 0 : i32
    %c0_i32_0 = arith.constant 0 : i32
    return %c0_i32, %arg0 : i32, i32
  }
  func.func @transform_1(%arg0: i32) -> (i32, i32) {
    %c0_i32 = arith.constant 0 : i32
    %c0_i32_0 = arith.constant 0 : i32
    %c0_i32_1 = arith.constant 0 : i32
    return %c0_i32, %c0_i32_0 : i32, i32
  }
  func.func @transform_2(%arg0: i32) -> (i32, i32) {
    %c0_i32 = arith.constant 0 : i32
    %c0_i32_0 = arith.constant 0 : i32
    %c0_i32_1 = arith.constant 0 : i32
    return %c0_i32, %c0_i32_0 : i32, i32
  }
  func.func @transform_3(%arg0: i32) -> (i32, i32) {
    %c0_i32 = arith.constant 0 : i32
    %c0_i32_0 = arith.constant 0 : i32
    %c0_i32_1 = arith.constant 0 : i32
    return %c0_i32, %c0_i32_0 : i32, i32
  }
  func.func @transform_4(%arg0: i32) -> (i32, i32) {
    %c0_i32 = arith.constant 0 : i32
    %c0_i32_0 = arith.constant 0 : i32
    return %c0_i32, %arg0 : i32, i32
  }
}

</mosaic_0001>

<llo_original>
// kernel: tpu_custom_call.1
$region0: #{tpu_custom_call.1}
  #allocation0 [shape = 'u32[]', space=smem, size = 0x4, offset = 0x4, fixed_abs, tag = 'smem constant byte address 0x4 - core index']
  #allocation1 [shape = 'u32[72,128]{1,0:T(1,128)}', space=vmem, size = 0x9000, scoped, tag = 'internal scratch']
  %s0 = inlined_call_operand.vmem [shape: f32[16,128], index: 0, kind: input, shape index: {}]
  %s1 = inlined_call_operand.vmem [shape: bf16[128,16], index: 1, kind: input, shape index: {}]
  %s2 = inlined_call_operand.vmem [shape: bf16[168,64], index: 2, kind: input, shape index: {}]
  %s3 = inlined_call_operand.vmem [shape: f32[64,8], index: 3, kind: input, shape index: {}]
  %s4 = inlined_call_operand.hbm [shape: f32[20,128], index: 4, kind: output, shape index: {}]
  %s5 = sld [smem:[#allocation0]]
  $region26: #{tpu_custom_call.1} parent=0
    _
  %s7 = ssub.s32 1, %s5
  %s8 = scalar_select 0, %s7, %s5
  $region1: #{tpu_custom_call.1} parent=0
    #allocation2 [shape = 'u8[12288]{0}', space=vmem, size = 0x3000, scoped, tag = 'output window, operand 0, single buffered']
    #allocation3 [shape = 's32[1]{0}', space=sflag, size = 0x4, scoped, tag = 'scoped memory for tpu_custom_call.1']
    %9 = vsyncpa [#allocation3], 0
    // Predicated region
    $region2: #{tpu_custom_call.1} parent=1 // pred_check
      _
    $region3: #{tpu_custom_call.1} parent=1 // pred_check_branch
      %11 = sbr.rel (0) target = $region5
    $region4: #{tpu_custom_call.1} parent=1 // pred_region
      _
    $region5: #{tpu_custom_call.1} parent=1 // pred_fallthru
      _
    // Predicated region
    $region6: #{tpu_custom_call.1} parent=1 // pred_check
      _
    $region7: #{tpu_custom_call.1} parent=1 // pred_check_branch
      %13 = sbr.rel (0) target = $region9
    $region8: #{tpu_custom_call.1} parent=1 // pred_region
      _
    $region9: #{tpu_custom_call.1} parent=1 // pred_fallthru
      _
    // Predicated region
    $region10: #{tpu_custom_call.1} parent=1 // pred_check
      _
    $region11: #{tpu_custom_call.1} parent=1 // pred_check_branch
      %15 = sbr.rel (0) target = $region13
    $region12: #{tpu_custom_call.1} parent=1 // pred_region
      _
    $region13: #{tpu_custom_call.1} parent=1 // pred_fallthru
      _
    // Predicated region
    $region14: #{tpu_custom_call.1} parent=1 // pred_check
      _
    $region15: #{tpu_custom_call.1} parent=1 // pred_check_branch
      %17 = sbr.rel (0) target = $region17
    $region16: #{tpu_custom_call.1} parent=1 // pred_region
      _
    $region17: #{tpu_custom_call.1} parent=1 // pred_fallthru
      _
    %v19 = vld [vmem:[%s0] sm:$0xff]
    %v20 = vld [vmem:[%s0 + $0x8] sm:$0xff]
    %v21 = vld [vmem:[%s1] sm:$0xf]
    %v22 = vld [vmem:[%s1 + $0x4] sm:$0xf]
    %v23 = vld [vmem:[%s1 + $0x8] sm:$0xf]
    %v24 = vld [vmem:[%s1 + $0xc] sm:$0xf]
    %v25 = vld [vmem:[%s1 + $0x10] sm:$0xf]
    %v26 = vld [vmem:[%s1 + $0x14] sm:$0xf]
    %v27 = vld [vmem:[%s1 + $0x18] sm:$0xf]
    %v28 = vld [vmem:[%s1 + $0x1c] sm:$0xf]
    %v29 = vld [vmem:[%s1 + $0x20] sm:$0xf]
    %v30 = vld [vmem:[%s1 + $0x24] sm:$0xf]
    %v31 = vld [vmem:[%s1 + $0x28] sm:$0xf]
    %v32 = vld [vmem:[%s1 + $0x2c] sm:$0xf]
    %v33 = vld [vmem:[%s1 + $0x30] sm:$0xf]
    %v34 = vld [vmem:[%s1 + $0x34] sm:$0xf]
    %v35 = vld [vmem:[%s1 + $0x38] sm:$0xf]
    %v36 = vld [vmem:[%s1 + $0x3c] sm:$0xf]
    %v37 = vld [vmem:[%s2] sm:$0xf]
    %v38 = vld [vmem:[%s2 + $0x4] sm:$0xf]
    %v39 = vld [vmem:[%s2 + $0x8] sm:$0xf]
    %v40 = vld [vmem:[%s2 + $0xc] sm:$0xf]
    %v41 = vld [vmem:[%s2 + $0x10] sm:$0xf]
    %v42 = vld [vmem:[%s2 + $0x14] sm:$0xf]
    %v43 = vld [vmem:[%s2 + $0x18] sm:$0xf]
    %v44 = vld [vmem:[%s2 + $0x1c] sm:$0xf]
    %v45 = vld [vmem:[%s2 + $0x20] sm:$0xf]
    %v46 = vld [vmem:[%s2 + $0x24] sm:$0xf]
    %v47 = vld [vmem:[%s2 + $0x28] sm:$0xf]
    %v48 = vld [vmem:[%s2 + $0x2c] sm:$0xf]
    %v49 = vld [vmem:[%s2 + $0x30] sm:$0xf]
    %v50 = vld [vmem:[%s2 + $0x34] sm:$0xf]
    %v51 = vld [vmem:[%s2 + $0x38] sm:$0xf]
    %v52 = vld [vmem:[%s2 + $0x3c] sm:$0xf]
    %v53 = vld [vmem:[%s2 + $0x40] sm:$0xf]
    %v54 = vld [vmem:[%s2 + $0x44] sm:$0xf]
    %v55 = vld [vmem:[%s2 + $0x48] sm:$0xf]
    %v56 = vld [vmem:[%s2 + $0x4c] sm:$0xf]
    %v57 = vld [vmem:[%s2 + $0x50] sm:$0xf]
    %v58 = vld [vmem:[%s3] sm:$0xff]
    %v59 = vld [vmem:[%s3 + $0x8] sm:$0xff]
    %v60 = vld [vmem:[%s3 + $0x10] sm:$0xff]
    %v61 = vld [vmem:[%s3 + $0x18] sm:$0xff]
    %v62 = vld [vmem:[%s3 + $0x20] sm:$0xff]
    %v63 = vld [vmem:[%s3 + $0x28] sm:$0xff]
    %v64 = vld [vmem:[%s3 + $0x30] sm:$0xff]
    %v65 = vld [vmem:[%s3 + $0x38] sm:$0xff]
    %v66 = vpack.c.bf16 %v20, %v19
    %68 = vset.pattern.permute.xlu0 0
    %69 = vperm.xlu0 %68, %v58
    %v70 = vpop.permute.xlu0 %69
    %73 = vset.pattern.permute.xlu0 0
    %74 = vperm.xlu0 %73, %v59
    %v75 = vpop.permute.xlu0 %74
    %78 = vset.pattern.permute.xlu0 0
    %79 = vperm.xlu0 %78, %v60
    %v80 = vpop.permute.xlu0 %79
    %83 = vset.pattern.permute.xlu0 0
    %84 = vperm.xlu0 %83, %v61
    %v85 = vpop.permute.xlu0 %84
    %88 = vset.pattern.permute.xlu0 0
    %89 = vperm.xlu0 %88, %v62
    %v90 = vpop.permute.xlu0 %89
    %93 = vset.pattern.permute.xlu0 0
    %94 = vperm.xlu0 %93, %v63
    %v95 = vpop.permute.xlu0 %94
    %98 = vset.pattern.permute.xlu0 0
    %99 = vperm.xlu0 %98, %v64
    %v100 = vpop.permute.xlu0 %99
    %103 = vset.pattern.permute.xlu0 0
    %104 = vperm.xlu0 %103, %v65
    %v105 = vpop.permute.xlu0 %104
    %v115 = vunpack.c.l.b16 %v21
    %v116 = vunpack.c.l.b16 %v22
    %v117 = vunpack.c.l.b16 %v23
    %v118 = vunpack.c.l.b16 %v24
    %v119 = vunpack.c.l.b16 %v25
    %v120 = vunpack.c.l.b16 %v26
    %v121 = vunpack.c.l.b16 %v27
    %v122 = vunpack.c.l.b16 %v28
    %v123 = vpack.c.b16 %v116, %v115
    %v124 = vpack.c.b16 %v118, %v117
    %v125 = vpack.c.b16 %v120, %v119
    %v126 = vpack.c.b16 %v122, %v121
    %vm127 = vcmask 130048
    %v129 = vsel %vm127, %v123, 0
    %v132 = vsel %vm127, %v124, 0
    %v135 = vsel %vm127, %v125, 0
    %v138 = vsel %vm127, %v126, 0
    %140 = vmatpush.bf16.msra.mxu0 0
    %141 = vmatpush.bf16.msra.mxu0 0
    %142 = vmatpush.bf16.msra.mxu0 0
    %143 = vmatpush.bf16.msra.mxu0 0
    %144 = vmatpush.bf16.msra.mxu0 0
    %145 = vmatpush.bf16.msra.mxu0 0
    %146 = vmatpush.bf16.msra.mxu0 0
    %147 = vmatpush.bf16.msra.mxu0 %v66
    %148 = vmatmul.bf16.gmra.mxu0 %v129
    %v149 = vpop.f32.mrf.mxu0
    %v150 = vadd.f32 %v70, %v149
    %v151 = vpop.f32.mrf.mxu0
    %v152 = vadd.f32 %v75, %v151
    %153 = vmatmul.bf16.gmra.mxu0 %v132
    %v154 = vpop.f32.mrf.mxu0
    %v155 = vadd.f32 %v80, %v154
    %v156 = vpop.f32.mrf.mxu0
    %v157 = vadd.f32 %v85, %v156
    %158 = vmatmul.bf16.gmra.mxu0 %v135
    %v159 = vpop.f32.mrf.mxu0
    %v160 = vadd.f32 %v90, %v159
    %v161 = vpop.f32.mrf.mxu0
    %v162 = vadd.f32 %v95, %v161
    %163 = vmatmul.bf16.gmra.mxu0 %v138
    %v164 = vpop.f32.mrf.mxu0
    %v165 = vadd.f32 %v100, %v164
    %v166 = vpop.f32.mrf.mxu0
    %v167 = vadd.f32 %v105, %v166
    %168 = vdwg.mxu0
    %v169 = vmax.f32 %v150, 0.0
    %v170 = vmax.f32 %v152, 0.0
    %v171 = vmax.f32 %v155, 0.0
    %v172 = vmax.f32 %v157, 0.0
    %v173 = vmax.f32 %v160, 0.0
    %v174 = vmax.f32 %v162, 0.0
    %v175 = vmax.f32 %v165, 0.0
    %v176 = vmax.f32 %v167, 0.0
    %v177 = vpack.c.bf16 %v170, %v169
    %v178 = vpack.c.bf16 %v172, %v171
    %v179 = vpack.c.bf16 %v174, %v173
    %v180 = vpack.c.bf16 %v176, %v175
    %181 = vset.pattern.permute.xlu0 1
    %182 = vperm.xlu0 %181, %v58
    %v183 = vpop.permute.xlu0 %182
    %185 = vset.pattern.permute.xlu0 1
    %186 = vperm.xlu0 %185, %v59
    %v187 = vpop.permute.xlu0 %186
    %189 = vset.pattern.permute.xlu0 1
    %190 = vperm.xlu0 %189, %v60
    %v191 = vpop.permute.xlu0 %190
    %193 = vset.pattern.permute.xlu0 1
    %194 = vperm.xlu0 %193, %v61
    %v195 = vpop.permute.xlu0 %194
    %197 = vset.pattern.permute.xlu0 1
    %198 = vperm.xlu0 %197, %v62
    %v199 = vpop.permute.xlu0 %198
    %201 = vset.pattern.permute.xlu0 1
    %202 = vperm.xlu0 %201, %v63
    %v203 = vpop.permute.xlu0 %202
    %205 = vset.pattern.permute.xlu0 1
    %206 = vperm.xlu0 %205, %v64
    %v207 = vpop.permute.xlu0 %206
    %209 = vset.pattern.permute.xlu0 1
    %210 = vperm.xlu0 %209, %v65
    %v211 = vpop.permute.xlu0 %210
    %v221 = vunpack.c.l.b16 %v37
    %v222 = vunpack.c.l.b16 %v38
    %v223 = vunpack.c.l.b16 %v39
    %v224 = vunpack.c.l.b16 %v40
    %v225 = vunpack.c.l.b16 %v41
    %v226 = vunpack.c.l.b16 %v42
    %v227 = vunpack.c.l.b16 %v43
    %v228 = vunpack.c.l.b16 %v44
    %v229 = vpack.c.b16 %v222, %v221
    %v230 = vpack.c.b16 %v224, %v223
    %v231 = vpack.c.b16 %v226, %v225
    %v232 = vpack.c.b16 %v228, %v227
    %vm233 = vcmask 523264
    %v235 = vsel %vm233, %v229, 0
    %v238 = vsel %vm233, %v230, 0
    %v241 = vsel %vm233, %v231, 0
    %v244 = vsel %vm233, %v232, 0
    %246 = vmatpush.bf16.msra.mxu0 0
    %247 = vmatpush.bf16.msra.mxu0 0
    %248 = vmatpush.bf16.msra.mxu0 0
    %249 = vmatpush.bf16.msra.mxu0 0
    %250 = vmatpush.bf16.msra.mxu0 %v180
    %251 = vmatpush.bf16.msra.mxu0 %v179
    %252 = vmatpush.bf16.msra.mxu0 %v178
    %253 = vmatpush.bf16.msra.mxu0 %v177
    %254 = vmatmul.bf16.gmra.mxu0 %v235
    %v255 = vpop.f32.mrf.mxu0
    %v256 = vadd.f32 %v183, %v255
    %v257 = vpop.f32.mrf.mxu0
    %v258 = vadd.f32 %v187, %v257
    %259 = vmatmul.bf16.gmra.mxu0 %v238
    %v260 = vpop.f32.mrf.mxu0
    %v261 = vadd.f32 %v191, %v260
    %v262 = vpop.f32.mrf.mxu0
    %v263 = vadd.f32 %v195, %v262
    %264 = vmatmul.bf16.gmra.mxu0 %v241
    %v265 = vpop.f32.mrf.mxu0
    %v266 = vadd.f32 %v199, %v265
    %v267 = vpop.f32.mrf.mxu0
    %v268 = vadd.f32 %v203, %v267
    %269 = vmatmul.bf16.gmra.mxu0 %v244
    %v270 = vpop.f32.mrf.mxu0
    %v271 = vadd.f32 %v207, %v270
    %v272 = vpop.f32.mrf.mxu0
    %v273 = vadd.f32 %v211, %v272
    %274 = vdwg.mxu0
    %v275 = vmax.f32 %v256, 0.0
    %v276 = vmax.f32 %v258, 0.0
    %v277 = vmax.f32 %v261, 0.0
    %v278 = vmax.f32 %v263, 0.0
    %v279 = vmax.f32 %v266, 0.0
    %v280 = vmax.f32 %v268, 0.0
    %v281 = vmax.f32 %v271, 0.0
    %v282 = vmax.f32 %v273, 0.0
    %v283 = vpack.c.bf16 %v276, %v275
    %v284 = vpack.c.bf16 %v278, %v277
    %v285 = vpack.c.bf16 %v280, %v279
    %v286 = vpack.c.bf16 %v282, %v281
    %287 = vset.pattern.permute.xlu0 2
    %288 = vperm.xlu0 %287, %v58
    %v289 = vpop.permute.xlu0 %288
    %291 = vset.pattern.permute.xlu0 2
    %292 = vperm.xlu0 %291, %v59
    %v293 = vpop.permute.xlu0 %292
    %v297 = vunpack.c.l.b16 %v53
    %v298 = vunpack.c.l.b16 %v54
    %v299 = vpack.c.b16 %v298, %v297
    %v301 = vsel %vm233, %v299, 0
    %303 = vmatpush.bf16.msra.mxu0 0
    %304 = vmatpush.bf16.msra.mxu0 0
    %305 = vmatpush.bf16.msra.mxu0 0
    %306 = vmatpush.bf16.msra.mxu0 0
    %307 = vmatpush.bf16.msra.mxu0 %v286
    %308 = vmatpush.bf16.msra.mxu0 %v285
    %309 = vmatpush.bf16.msra.mxu0 %v284
    %310 = vmatpush.bf16.msra.mxu0 %v283
    %311 = vmatmul.bf16.gmra.mxu0 %v301
    %v312 = vpop.f32.mrf.mxu0
    %v313 = vadd.f32 %v289, %v312
    %v314 = vpop.f32.mrf.mxu0
    %v315 = vadd.f32 %v293, %v314
    %316 = vdwg.mxu0
    %v317 = vmax.f32 %v313, 0.0
    %v318 = vmax.f32 %v315, 0.0
    %v319 = vadd.f32 %v317, %v19
    %v320 = vadd.f32 %v318, %v20
    %v321 = vpack.c.bf16 %v320, %v319
    %322 = vset.pattern.permute.xlu0 3
    %323 = vperm.xlu0 %322, %v58
    %v324 = vpop.permute.xlu0 %323
    %326 = vset.pattern.permute.xlu0 3
    %327 = vperm.xlu0 %326, %v59
    %v328 = vpop.permute.xlu0 %327
    %330 = vset.pattern.permute.xlu0 3
    %331 = vperm.xlu0 %330, %v60
    %v332 = vpop.permute.xlu0 %331
    %334 = vset.pattern.permute.xlu0 3
    %335 = vperm.xlu0 %334, %v61
    %v336 = vpop.permute.xlu0 %335
    %338 = vset.pattern.permute.xlu0 3
    %339 = vperm.xlu0 %338, %v62
    %v340 = vpop.permute.xlu0 %339
    %342 = vset.pattern.permute.xlu0 3
    %343 = vperm.xlu0 %342, %v63
    %v344 = vpop.permute.xlu0 %343
    %346 = vset.pattern.permute.xlu0 3
    %347 = vperm.xlu0 %346, %v64
    %v348 = vpop.permute.xlu0 %347
    %350 = vset.pattern.permute.xlu0 3
    %351 = vperm.xlu0 %350, %v65
    %v352 = vpop.permute.xlu0 %351
    %v362 = vunpack.c.l.b16 %v29
    %v363 = vunpack.c.l.b16 %v30
    %v364 = vunpack.c.l.b16 %v31
    %v365 = vunpack.c.l.b16 %v32
    %v366 = vunpack.c.l.b16 %v33
    %v367 = vunpack.c.l.b16 %v34
    %v368 = vunpack.c.l.b16 %v35
    %v369 = vunpack.c.l.b16 %v36
    %v370 = vpack.c.b16 %v363, %v362
    %v371 = vpack.c.b16 %v365, %v364
    %v372 = vpack.c.b16 %v367, %v366
    %v373 = vpack.c.b16 %v369, %v368
    %v375 = vsel %vm127, %v370, 0
    %v378 = vsel %vm127, %v371, 0
    %v381 = vsel %vm127, %v372, 0
    %v384 = vsel %vm127, %v373, 0
    %386 = vmatpush.bf16.msra.mxu0 0
    %387 = vmatpush.bf16.msra.mxu0 0
    %388 = vmatpush.bf16.msra.mxu0 0
    %389 = vmatpush.bf16.msra.mxu0 0
    %390 = vmatpush.bf16.msra.mxu0 0
    %391 = vmatpush.bf16.msra.mxu0 0
    %392 = vmatpush.bf16.msra.mxu0 0
    %393 = vmatpush.bf16.msra.mxu0 %v321
    %394 = vmatmul.bf16.gmra.mxu0 %v375
    %v395 = vpop.f32.mrf.mxu0
    %v396 = vadd.f32 %v324, %v395
    %v397 = vpop.f32.mrf.mxu0
    %v398 = vadd.f32 %v328, %v397
    %399 = vmatmul.bf16.gmra.mxu0 %v378
    %v400 = vpop.f32.mrf.mxu0
    %v401 = vadd.f32 %v332, %v400
    %v402 = vpop.f32.mrf.mxu0
    %v403 = vadd.f32 %v336, %v402
    %404 = vmatmul.bf16.gmra.mxu0 %v381
    %v405 = vpop.f32.mrf.mxu0
    %v406 = vadd.f32 %v340, %v405
    %v407 = vpop.f32.mrf.mxu0
    %v408 = vadd.f32 %v344, %v407
    %409 = vmatmul.bf16.gmra.mxu0 %v384
    %v410 = vpop.f32.mrf.mxu0
    %v411 = vadd.f32 %v348, %v410
    %v412 = vpop.f32.mrf.mxu0
    %v413 = vadd.f32 %v352, %v412
    %414 = vdwg.mxu0
    %v415 = vmax.f32 %v396, 0.0
    %v416 = vmax.f32 %v398, 0.0
    %v417 = vmax.f32 %v401, 0.0
    %v418 = vmax.f32 %v403, 0.0
    %v419 = vmax.f32 %v406, 0.0
    %v420 = vmax.f32 %v408, 0.0
    %v421 = vmax.f32 %v411, 0.0
    %v422 = vmax.f32 %v413, 0.0
    %v423 = vpack.c.bf16 %v416, %v415
    %v424 = vpack.c.bf16 %v418, %v417
    %v425 = vpack.c.bf16 %v420, %v419
    %v426 = vpack.c.bf16 %v422, %v421
    %427 = vset.pattern.permute.xlu0 4
    %428 = vperm.xlu0 %427, %v58
    %v429 = vpop.permute.xlu0 %428
    %431 = vset.pattern.permute.xlu0 4
    %432 = vperm.xlu0 %431, %v59
    %v433 = vpop.permute.xlu0 %432
    %435 = vset.pattern.permute.xlu0 4
    %436 = vperm.xlu0 %435, %v60
    %v437 = vpop.permute.xlu0 %436
    %439 = vset.pattern.permute.xlu0 4
    %440 = vperm.xlu0 %439, %v61
    %v441 = vpop.permute.xlu0 %440
    %443 = vset.pattern.permute.xlu0 4
    %444 = vperm.xlu0 %443, %v62
    %v445 = vpop.permute.xlu0 %444
    %447 = vset.pattern.permute.xlu0 4
    %448 = vperm.xlu0 %447, %v63
    %v449 = vpop.permute.xlu0 %448
    %451 = vset.pattern.permute.xlu0 4
    %452 = vperm.xlu0 %451, %v64
    %v453 = vpop.permute.xlu0 %452
    %455 = vset.pattern.permute.xlu0 4
    %456 = vperm.xlu0 %455, %v65
    %v457 = vpop.permute.xlu0 %456
    %v467 = vunpack.c.l.b16 %v45
    %v468 = vunpack.c.l.b16 %v46
    %v469 = vunpack.c.l.b16 %v47
    %v470 = vunpack.c.l.b16 %v48
    %v471 = vunpack.c.l.b16 %v49
    %v472 = vunpack.c.l.b16 %v50
    %v473 = vunpack.c.l.b16 %v51
    %v474 = vunpack.c.l.b16 %v52
    %v475 = vpack.c.b16 %v468, %v467
    %v476 = vpack.c.b16 %v470, %v469
    %v477 = vpack.c.b16 %v472, %v471
    %v478 = vpack.c.b16 %v474, %v473
    %v480 = vsel %vm233, %v475, 0
    %v483 = vsel %vm233, %v476, 0
    %v486 = vsel %vm233, %v477, 0
    %v489 = vsel %vm233, %v478, 0
    %491 = vmatpush.bf16.msra.mxu0 0
    %492 = vmatpush.bf16.msra.mxu0 0
    %493 = vmatpush.bf16.msra.mxu0 0
    %494 = vmatpush.bf16.msra.mxu0 0
    %495 = vmatpush.bf16.msra.mxu0 %v426
    %496 = vmatpush.bf16.msra.mxu0 %v425
    %497 = vmatpush.bf16.msra.mxu0 %v424
    %498 = vmatpush.bf16.msra.mxu0 %v423
    %499 = vmatmul.bf16.gmra.mxu0 %v480
    %v500 = vpop.f32.mrf.mxu0
    %v501 = vadd.f32 %v429, %v500
    %v502 = vpop.f32.mrf.mxu0
    %v503 = vadd.f32 %v433, %v502
    %504 = vmatmul.bf16.gmra.mxu0 %v483
    %v505 = vpop.f32.mrf.mxu0
    %v506 = vadd.f32 %v437, %v505
    %v507 = vpop.f32.mrf.mxu0
    %v508 = vadd.f32 %v441, %v507
    %509 = vmatmul.bf16.gmra.mxu0 %v486
    %v510 = vpop.f32.mrf.mxu0
    %v511 = vadd.f32 %v445, %v510
    %v512 = vpop.f32.mrf.mxu0
    %v513 = vadd.f32 %v449, %v512
    %514 = vmatmul.bf16.gmra.mxu0 %v489
    %v515 = vpop.f32.mrf.mxu0
    %v516 = vadd.f32 %v453, %v515
    %v517 = vpop.f32.mrf.mxu0
    %v518 = vadd.f32 %v457, %v517
    %519 = vdwg.mxu0
    %v520 = vmax.f32 %v501, 0.0
    %v521 = vmax.f32 %v503, 0.0
    %v522 = vmax.f32 %v506, 0.0
    %v523 = vmax.f32 %v508, 0.0
    %v524 = vmax.f32 %v511, 0.0
    %v525 = vmax.f32 %v513, 0.0
    %v526 = vmax.f32 %v516, 0.0
    %v527 = vmax.f32 %v518, 0.0
    %v528 = vpack.c.bf16 %v521, %v520
    %v529 = vpack.c.bf16 %v523, %v522
    %v530 = vpack.c.bf16 %v525, %v524
    %v531 = vpack.c.bf16 %v527, %v526
    %532 = vset.pattern.permute.xlu0 5
    %533 = vperm.xlu0 %532, %v58
    %v534 = vpop.permute.xlu0 %533
    %536 = vset.pattern.permute.xlu0 5
    %537 = vperm.xlu0 %536, %v59
    %v538 = vpop.permute.xlu0 %537
    %540 = vset.pattern.permute.xlu0 5
    %541 = vperm.xlu0 %540, %v60
    %v542 = vpop.permute.xlu0 %541
    %v547 = vunpack.c.l.b16 %v55
    %v548 = vunpack.c.l.b16 %v56
    %v549 = vunpack.c.l.b16 %v57
    %v550 = vpack.c.b16 %v548, %v547
    %v551 = vpack.c.b16 %v549, %v549
    %v553 = vsel %vm233, %v550, 0
    %v556 = vsel %vm233, %v551, 0
    %558 = vmatpush.bf16.msra.mxu0 0
    %559 = vmatpush.bf16.msra.mxu0 0
    %560 = vmatpush.bf16.msra.mxu0 0
    %561 = vmatpush.bf16.msra.mxu0 0
    %562 = vmatpush.bf16.msra.mxu0 %v531
    %563 = vmatpush.bf16.msra.mxu0 %v530
    %564 = vmatpush.bf16.msra.mxu0 %v529
    %565 = vmatpush.bf16.msra.mxu0 %v528
    %566 = vmatmul.bf16.gmra.mxu0 %v553
    %v567 = vpop.f32.mrf.mxu0
    %v568 = vadd.f32 %v534, %v567
    %v569 = vpop.f32.mrf.mxu0
    %v570 = vadd.f32 %v538, %v569
    %571 = vmatmul.bf16.gmra.mxu0 %v556
    %v572 = vpop.f32.mrf.mxu0
    %v573 = vadd.f32 %v542, %v572
    %v574 = vpop.f32.mrf.mxu0
    %575 = vdwg.mxu0
    %vm576 = vcmask 1043456
    %v577 = vsel %vm576, %v573, -inf
    %v578 = vmax.f32 %v568, %v570
    %v579 = vmax.f32 %v578, %v577
    %v580 = vrot.slane %v579, 4
    %v581 = vmax.f32 %v579, %v580
    %v582 = vrot.slane %v581, 2
    %v583 = vmax.f32 %v581, %v582
    %v584 = vrot.slane %v583, 1
    %v585 = vmax.f32 %v583, %v584
    %v586 = vsub.f32 %v568, %v585
    %v587 = vsub.f32 %v570, %v585
    %v588 = vsub.f32 %v573, %v585
    %v589 = vmul.f32 %v586, 1.442695
    %v590 = vpow.pop %v589
    %v591 = vmul.f32 %v587, 1.442695
    %v592 = vpow.pop %v591
    %v593 = vmul.f32 %v588, 1.442695
    %v594 = vpow.pop %v593
    %v595 = vadd.f32 %v590, %v592
    %v596 = vsel %vm576, %v594, 0.0
    %v597 = vadd.f32 %v595, %v596
    %v598 = vrot.slane %v597, 4
    %v599 = vadd.f32 %v597, %v598
    %v600 = vrot.slane %v599, 2
    %v601 = vadd.f32 %v599, %v600
    %v602 = vrot.slane %v601, 1
    %v603 = vadd.f32 %v601, %v602
    %v604 = vrcp.pop %v603
    %v605 = vmul.f32 %v603, %v604
    %v606 = vsub.f32 1.0, %v605
    %v607 = vmul.f32 %v604, %v606
    %v608 = vadd.f32 %v604, %v607
    %vm609 = vweird.f32 %v603
    %vm610 = vweird.f32 %v604
    %vm611 = vmor %vm609, %vm610
    %v612 = vsel %vm611, %v604, %v608
    %v613 = vand.u32 2147483647, %v603
    %vm614 = vcmp.eq.f32.partialorder %v613, 8.507059e+37
    %v615 = vand.u32 %v603, 2147483648
    %v616 = vor.u32 1.1754944e-38, %v615
    %v617 = vsel %vm614, %v616, %v612
    %v618 = vmul.f32 %v590, %v617
    %v619 = vmul.f32 %v592, %v617
    %v620 = vmul.f32 %v594, %v617
    %621 = vst [vmem:[#allocation2] sm:$0xff] %v618
    %622 = vst [vmem:[#allocation2 + $0x8] sm:$0xff] %v619
    %623 = vst [vmem:[#allocation2 + $0x10] sm:$0xf] %v620
    // Predicated region
    $region18: #{tpu_custom_call.1} parent=1 // pred_check
      _
    $region19: #{tpu_custom_call.1} parent=1 // pred_check_branch
      %625 = sbr.rel (0) target = $region21
    $region20: #{tpu_custom_call.1} parent=1 // pred_region
      %627 = vsyncadd [#allocation3], 0
      %s628 = sshll.u32 [#allocation2], 4
      %s629 = int_to_ptr.vmem [resolvable:$true] %s628
      %s630 = sshll.u32 %s4, 4
      %s631 = int_to_ptr.hbm [resolvable:$true] %s630
      %636 = dma.vmem_to_hbm [thread:$0]  %s629, 384, %s631, [#allocation3], 128, 128, 8
    $region21: #{tpu_custom_call.1} parent=1 // pred_fallthru
      _
    // Predicated region
    $region22: #{tpu_custom_call.1} parent=1 // pred_check
      _
    $region23: #{tpu_custom_call.1} parent=1 // pred_check_branch
      %638 = sbr.rel (0) target = $region25
    $region24: #{tpu_custom_call.1} parent=1 // pred_region
      %640 = dma.done [#allocation3], 384
    $region25: #{tpu_custom_call.1} parent=1 // pred_fallthru
      _
    %641 = vsyncpa [#allocation3], 1

</llo_original>
